<compile_context>
chip_gen: v6e
topology: v6e:2x2x1
jax: 0.10.0
libtpu: 0.0.40
codegen_flags: <defaults>
</compile_context>

<pallas_src>
import functools
import math

import jax
import jax.numpy as jnp
from jax.experimental import pallas as pl
from jax.experimental.pallas import tpu as pltpu

SAMPLE_RATE = 500
N_FFT = 256
HOP = 128                        # hop_length; also the chunk size shipped to the kernel
N_MELS = 128
F_MIN = 0.5
F_MAX = 100.0
N_FREQS_FULL = N_FFT // 2 + 1    # 129 one-sided bins (torchaudio)
N_FREQ = 128                     # truncated, lane-aligned: fb rows >= 52 are all zero
N_OUT = 3                        # channel_fusion = Conv2d(eeg_channels, 3, 1)


# ---------------------------------------------------------------------------
# Glue: mel filterbank (torchaudio melscale_fbanks, htk scale, norm=None) and
#       windowed real-DFT matrix (periodic Hann folded into the DFT).
# ---------------------------------------------------------------------------
def _hz_to_mel(f):
    return 2595.0 * jnp.log10(1.0 + f / 700.0)


def _mel_to_hz(m):
    return 700.0 * (10.0 ** (m / 2595.0) - 1.0)


def make_mel_fb():
    all_freqs = jnp.linspace(0.0, SAMPLE_RATE / 2.0, N_FREQS_FULL)
    m_min = _hz_to_mel(jnp.float32(F_MIN))
    m_max = _hz_to_mel(jnp.float32(F_MAX))
    m_pts = jnp.linspace(m_min, m_max, N_MELS + 2)
    f_pts = _mel_to_hz(m_pts)
    f_diff = f_pts[1:] - f_pts[:-1]
    slopes = f_pts[None, :] - all_freqs[:, None]          # (n_freqs, n_mels+2)
    down = -slopes[:, :-2] / f_diff[:-1]
    up = slopes[:, 2:] / f_diff[1:]
    fb = jnp.maximum(0.0, jnp.minimum(down, up))          # (129, N_MELS)
    # Rows >= 52 (freqs >= 101.6 Hz > f_max) are all zero, so truncating to the
    # first 128 lane-aligned rows is exact.
    return fb[:N_FREQ, :].astype(jnp.bfloat16)            # (N_FREQ, N_MELS)


def make_dft_mats():
    n = jnp.arange(N_FFT, dtype=jnp.float32)
    k = jnp.arange(N_FREQ, dtype=jnp.float32)
    ang = 2.0 * math.pi * n[:, None] * k[None, :] / N_FFT
    window = 0.5 * (1.0 - jnp.cos(2.0 * math.pi * n / N_FFT))   # periodic Hann
    cos_m = window[:, None] * jnp.cos(ang)
    sin_m = window[:, None] * jnp.sin(ang)                      # sign irrelevant for power
    # Concatenate cos|sin along lanes -> one 256-lane-dense RHS.
    return jnp.concatenate([cos_m, sin_m], axis=1).astype(jnp.bfloat16)  # (N_FFT, 2*N_FREQ)


# ---------------------------------------------------------------------------
# Pallas kernel: per batch element, windowed DFT for all channels at once,
# |.|^2 power, 1x1-conv channel fusion, mel filterbank, clamp/log/clamp.
# ---------------------------------------------------------------------------
def spectrogram_kernel(chunks_ref, cossin_ref, fb_ref, w_ref, b_ref, out_ref,
                       *, n_ch, f_pad, n_chunk_pad):
    # chunks_ref: (1, n_ch * n_chunk_pad, HOP) bf16.  Row r holds hop-chunk
    # (r % n_chunk_pad) of channel (r // n_chunk_pad); frame f of a channel is
    # the concatenation of its chunks f and f+1 (50% overlap).
    lo = chunks_ref[0, :, :]                                     # (M, HOP) bf16

    # Windowed real DFT split over the two half-frames:
    #   frame_dft[f] = chunk[f] @ W[:128] + chunk[f+1] @ W[128:]
    # Both matmuls are bf16 with f32 accumulation and a 256-lane-dense output.
    dft_lo = jnp.dot(lo, cossin_ref[:HOP, :], preferred_element_type=jnp.float32)
    dft_hi = jnp.dot(lo, cossin_ref[HOP:, :], preferred_element_type=jnp.float32)
    # Shift the high-half contribution down by one chunk row (cheap f32 shuffle)
    # instead of DMA-ing overlapped frames from HBM.
    dft_hi_next = jnp.concatenate(
        [dft_hi[1:, :], jnp.zeros((1, 2 * N_FREQ), jnp.float32)], axis=0)
    re_im = dft_lo + dft_hi_next                                 # (M, 2*N_FREQ)
    re = re_im[:, :N_FREQ]
    im = re_im[:, N_FREQ:]
    power = re * re + im * im                                    # (M, N_FREQ) f32

    # 1x1 conv channel fusion on the power spectra (before the mel matmul):
    # fused[o] = sum_c w[o, c] * power_c  -> only N_OUT row-blocks go through fb.
    fused = []
    for o in range(N_OUT):
        acc = None
        for c in range(n_ch):
            blk = power[c * n_chunk_pad:c * n_chunk_pad + f_pad, :]
            term = w_ref[o, c] * blk
            acc = term if acc is None else acc + term
        fused.append(acc)
    fused = jnp.concatenate(fused, axis=0)                       # (N_OUT*f_pad, N_FREQ)

    # Mel filterbank matmul (bf16 operands, f32 accumulation).
    mel = jnp.dot(fused.astype(jnp.bfloat16), fb_ref[...],
                  preferred_element_type=jnp.float32)            # (N_OUT*f_pad, N_MELS)

    # Conv bias + clamp(min=1e-6) -> log(x + 1e-6) -> clamp(-5, 5); single
    # lane-dense store to out_ref.
    bias = jnp.concatenate(
        [jnp.full((f_pad, N_MELS), b_ref[o], jnp.float32) for o in range(N_OUT)],
        axis=0)
    v = jnp.maximum(mel + bias, 1e-6)
    v = jnp.log(v + 1e-6)
    v = jnp.clip(v, -5.0, 5.0)
    out_ref[...] = v.reshape(1, N_OUT, f_pad, N_MELS)


# ---------------------------------------------------------------------------
# Wrapper (reflect pad + chunking glue + pallas_call).
# ---------------------------------------------------------------------------
def spectrogram_generator(eeg, w_fuse, b_fuse, noise_key):
    B, C, T = eeg.shape
    x = jnp.clip(eeg.astype(jnp.float32), -10.0, 10.0)
    # TODO(synk): torch.randn_like noise uses torch RNG; a JAX key is used here
    # (same 1e-6 magnitude, values differ bitwise).
    x = x + jax.random.normal(noise_key, x.shape, jnp.float32) * 1e-6

    # center=True reflect padding; instead of materializing 50%-overlapped frames
    # (2x HBM traffic), ship hop-sized chunks and realize the overlap in-kernel.
    pad = N_FFT // 2
    xp = jnp.pad(x, ((0, 0), (0, 0), (pad, pad)), mode="reflect")
    n_frames = 1 + T // HOP
    n_chunks = n_frames + 1                          # frame f = chunks (f, f+1)
    xp = xp[:, :, : n_chunks * HOP]
    f_pad = max(8, ((n_frames + 7) // 8) * 8)        # sublane-align frame axis
    n_chunk_pad = f_pad if f_pad >= n_chunks else f_pad + 8
    chunks = xp.reshape(B, C, n_chunks, HOP)
    chunks = jnp.pad(chunks, ((0, 0), (0, 0), (0, n_chunk_pad - n_chunks), (0, 0)))
    # Fold channels into the matmul M axis; bf16 halves the input DMA bytes.
    chunks = chunks.reshape(B, C * n_chunk_pad, HOP).astype(jnp.bfloat16)

    cossin = make_dft_mats()                         # (N_FFT, 2*N_FREQ) bf16
    fb = make_mel_fb()                               # (N_FREQ, N_MELS) bf16

    kernel = functools.partial(spectrogram_kernel, n_ch=C, f_pad=f_pad,
                               n_chunk_pad=n_chunk_pad)
    # TODO(synk): for minutes-long recordings add a frame-tile grid axis so the
    # per-step chunk block stays well under the v7x 64 MiB VMEM budget.
    out = pl.pallas_call(
        kernel,
        out_shape=jax.ShapeDtypeStruct((B, N_OUT, f_pad, N_MELS), jnp.float32),
        grid=(B,),
        in_specs=[
            pl.BlockSpec((1, C * n_chunk_pad, HOP), lambda b: (b, 0, 0)),
            pl.BlockSpec((N_FFT, 2 * N_FREQ), lambda b: (0, 0)),
            pl.BlockSpec((N_FREQ, N_MELS), lambda b: (0, 0)),
            pl.BlockSpec(memory_space=pltpu.MemorySpace.SMEM),   # fusion weight (3, C)
            pl.BlockSpec(memory_space=pltpu.MemorySpace.SMEM),   # fusion bias (3,)
        ],
        out_specs=pl.BlockSpec((1, N_OUT, f_pad, N_MELS), lambda b: (b, 0, 0, 0)),
        compiler_params=pltpu.CompilerParams(dimension_semantics=("parallel",)),
    )(chunks, cossin, fb, w_fuse, b_fuse)

    # (B, 3, f_pad, N_MELS) -> NCHW-style (B, 3, mel_bins, n_frames)
    return jnp.transpose(out[:, :, :n_frames, :], (0, 1, 3, 2))


if __name__ == "__main__":
    key = jax.random.PRNGKey(0)
    k_eeg, k_w, k_b, k_noise = jax.random.split(key, 4)

    B, C, T = 2, 4, 512           # small shapes: batch=2, eeg_channels=4, 512 samples
    eeg = jax.random.normal(k_eeg, (B, C, T), jnp.float32) * 3.0

    # Deterministic Conv2d(C, 3, kernel_size=1) parameters (kaiming-uniform style bound).
    bound = 1.0 / math.sqrt(C)
    w_fuse = jax.random.uniform(k_w, (N_OUT, C), jnp.float32, -bound, bound)
    b_fuse = jax.random.uniform(k_b, (N_OUT,), jnp.float32, -bound, bound)

    out = spectrogram_generator(eeg, w_fuse, b_fuse, k_noise)
    out = jax.block_until_ready(out)
    assert out.shape == (B, N_OUT, N_MELS, 1 + T // HOP), out.shape
    assert bool(jnp.all(jnp.isfinite(out)))
    print("KERNEL_OK")
</pallas_src>

<mosaic_0001>
module attributes {stable_mosaic.version = 11 : i64} {
  func.func @spectrogram_kernel(%arg0: i32, %arg1: memref<1x32x128xbf16, #tpu.memory_space<vmem>>, %arg2: memref<256x256xbf16, #tpu.memory_space<vmem>>, %arg3: memref<128x128xbf16, #tpu.memory_space<vmem>>, %arg4: memref<3x4xf32, #tpu.memory_space<smem>>, %arg5: memref<3xf32, #tpu.memory_space<smem>>, %arg6: memref<1x3x8x128xf32, #tpu.memory_space<vmem>>) attributes {dimension_semantics = [#tpu.dimension_semantics<parallel>], iteration_bounds = array<i64: 2>, scalar_prefetch = 0 : i64, scratch_operands = 0 : i64, tpu.core_type = #tpu.core_type<tc>, window_params = [{transform_indices = @transform_0, window_bounds = array<i64: 1, 32, 128>}, {pipeline_mode = #tpu.pipeline_mode<synchronous>, transform_indices = @transform_1, window_bounds = array<i64: 256, 256>}, {pipeline_mode = #tpu.pipeline_mode<synchronous>, transform_indices = @transform_2, window_bounds = array<i64: 128, 128>}, {transform_indices = @transform_3, window_bounds = array<i64: 3, 4>}, {transform_indices = @transform_4, window_bounds = array<i64: 3>}, {transform_indices = @transform_5, window_bounds = array<i64: 1, 3, 8, 128>}]} {
    %c0 = arith.constant 0 : index
    %c0_0 = arith.constant 0 : index
    %c0_1 = arith.constant 0 : index
    %0 = vector.load %arg1[%c0, %c0_0, %c0_1] : memref<1x32x128xbf16, #tpu.memory_space<vmem>>, vector<1x32x128xbf16>
    %1 = vector.shape_cast %0 : vector<1x32x128xbf16> to vector<32x128xbf16>
    %c0_2 = arith.constant 0 : index
    %c0_3 = arith.constant 0 : index
    %2 = vector.load %arg2[%c0_2, %c0_3] : memref<256x256xbf16, #tpu.memory_space<vmem>>, vector<128x256xbf16>
    %cst = arith.constant dense<0.000000e+00> : vector<32x256xf32>
    %3 = tpu.matmul %1, %2, %cst {dimension_numbers = #tpu.dot_dimension_numbers<[1], [0], [0], [1], [0, 0, 1, 1], [], []>} : vector<32x128xbf16>, vector<128x256xbf16>, vector<32x256xf32> -> vector<32x256xf32>
    %c128 = arith.constant 128 : index
    %c0_4 = arith.constant 0 : index
    %4 = vector.load %arg2[%c128, %c0_4] : memref<256x256xbf16, #tpu.memory_space<vmem>>, vector<128x256xbf16>
    %cst_5 = arith.constant dense<0.000000e+00> : vector<32x256xf32>
    %5 = tpu.matmul %1, %4, %cst_5 {dimension_numbers = #tpu.dot_dimension_numbers<[1], [0], [0], [1], [0, 0, 1, 1], [], []>} : vector<32x128xbf16>, vector<128x256xbf16>, vector<32x256xf32> -> vector<32x256xf32>
    %6 = vector.extract_strided_slice %5 {offsets = [1, 0], sizes = [31, 256], strides = [1, 1]} : vector<32x256xf32> to vector<31x256xf32>
    %cst_6 = arith.constant 0.000000e+00 : f32
    %7 = vector.broadcast %cst_6 : f32 to vector<1x256xf32>
    %8 = tpu.concatenate %6, %7 in 0 : vector<31x256xf32>, vector<1x256xf32> -> vector<32x256xf32>
    %9 = arith.addf %3, %8 : vector<32x256xf32>
    %10 = vector.extract_strided_slice %9 {offsets = [0, 0], sizes = [32, 128], strides = [1, 1]} : vector<32x256xf32> to vector<32x128xf32>
    %11 = vector.extract_strided_slice %9 {offsets = [0, 128], sizes = [32, 128], strides = [1, 1]} : vector<32x256xf32> to vector<32x128xf32>
    %12 = arith.mulf %10, %10 : vector<32x128xf32>
    %13 = arith.mulf %11, %11 : vector<32x128xf32>
    %14 = arith.addf %12, %13 : vector<32x128xf32>
    %15 = vector.extract_strided_slice %14 {offsets = [0, 0], sizes = [8, 128], strides = [1, 1]} : vector<32x128xf32> to vector<8x128xf32>
    %c0_7 = arith.constant 0 : index
    %c0_8 = arith.constant 0 : index
    %16 = memref.load %arg4[%c0_7, %c0_8] : memref<3x4xf32, #tpu.memory_space<smem>>
    %17 = vector.broadcast %16 : f32 to vector<8x128xf32>
    %18 = arith.mulf %17, %15 : vector<8x128xf32>
    %19 = vector.extract_strided_slice %14 {offsets = [8, 0], sizes = [8, 128], strides = [1, 1]} : vector<32x128xf32> to vector<8x128xf32>
    %c0_9 = arith.constant 0 : index
    %c1 = arith.constant 1 : index
    %20 = memref.load %arg4[%c0_9, %c1] : memref<3x4xf32, #tpu.memory_space<smem>>
    %21 = vector.broadcast %20 : f32 to vector<8x128xf32>
    %22 = arith.mulf %21, %19 : vector<8x128xf32>
    %23 = arith.addf %18, %22 : vector<8x128xf32>
    %24 = vector.extract_strided_slice %14 {offsets = [16, 0], sizes = [8, 128], strides = [1, 1]} : vector<32x128xf32> to vector<8x128xf32>
    %c0_10 = arith.constant 0 : index
    %c2 = arith.constant 2 : index
    %25 = memref.load %arg4[%c0_10, %c2] : memref<3x4xf32, #tpu.memory_space<smem>>
    %26 = vector.broadcast %25 : f32 to vector<8x128xf32>
    %27 = arith.mulf %26, %24 : vector<8x128xf32>
    %28 = arith.addf %23, %27 : vector<8x128xf32>
    %29 = vector.extract_strided_slice %14 {offsets = [24, 0], sizes = [8, 128], strides = [1, 1]} : vector<32x128xf32> to vector<8x128xf32>
    %c0_11 = arith.constant 0 : index
    %c3 = arith.constant 3 : index
    %30 = memref.load %arg4[%c0_11, %c3] : memref<3x4xf32, #tpu.memory_space<smem>>
    %31 = vector.broadcast %30 : f32 to vector<8x128xf32>
    %32 = arith.mulf %31, %29 : vector<8x128xf32>
    %33 = arith.addf %28, %32 : vector<8x128xf32>
    %34 = vector.extract_strided_slice %14 {offsets = [0, 0], sizes = [8, 128], strides = [1, 1]} : vector<32x128xf32> to vector<8x128xf32>
    %c1_12 = arith.constant 1 : index
    %c0_13 = arith.constant 0 : index
    %35 = memref.load %arg4[%c1_12, %c0_13] : memref<3x4xf32, #tpu.memory_space<smem>>
    %36 = vector.broadcast %35 : f32 to vector<8x128xf32>
    %37 = arith.mulf %36, %34 : vector<8x128xf32>
    %38 = vector.extract_strided_slice %14 {offsets = [8, 0], sizes = [8, 128], strides = [1, 1]} : vector<32x128xf32> to vector<8x128xf32>
    %c1_14 = arith.constant 1 : index
    %c1_15 = arith.constant 1 : index
    %39 = memref.load %arg4[%c1_14, %c1_15] : memref<3x4xf32, #tpu.memory_space<smem>>
    %40 = vector.broadcast %39 : f32 to vector<8x128xf32>
    %41 = arith.mulf %40, %38 : vector<8x128xf32>
    %42 = arith.addf %37, %41 : vector<8x128xf32>
    %43 = vector.extract_strided_slice %14 {offsets = [16, 0], sizes = [8, 128], strides = [1, 1]} : vector<32x128xf32> to vector<8x128xf32>
    %c1_16 = arith.constant 1 : index
    %c2_17 = arith.constant 2 : index
    %44 = memref.load %arg4[%c1_16, %c2_17] : memref<3x4xf32, #tpu.memory_space<smem>>
    %45 = vector.broadcast %44 : f32 to vector<8x128xf32>
    %46 = arith.mulf %45, %43 : vector<8x128xf32>
    %47 = arith.addf %42, %46 : vector<8x128xf32>
    %48 = vector.extract_strided_slice %14 {offsets = [24, 0], sizes = [8, 128], strides = [1, 1]} : vector<32x128xf32> to vector<8x128xf32>
    %c1_18 = arith.constant 1 : index
    %c3_19 = arith.constant 3 : index
    %49 = memref.load %arg4[%c1_18, %c3_19] : memref<3x4xf32, #tpu.memory_space<smem>>
    %50 = vector.broadcast %49 : f32 to vector<8x128xf32>
    %51 = arith.mulf %50, %48 : vector<8x128xf32>
    %52 = arith.addf %47, %51 : vector<8x128xf32>
    %53 = vector.extract_strided_slice %14 {offsets = [0, 0], sizes = [8, 128], strides = [1, 1]} : vector<32x128xf32> to vector<8x128xf32>
    %c2_20 = arith.constant 2 : index
    %c0_21 = arith.constant 0 : index
    %54 = memref.load %arg4[%c2_20, %c0_21] : memref<3x4xf32, #tpu.memory_space<smem>>
    %55 = vector.broadcast %54 : f32 to vector<8x128xf32>
    %56 = arith.mulf %55, %53 : vector<8x128xf32>
    %57 = vector.extract_strided_slice %14 {offsets = [8, 0], sizes = [8, 128], strides = [1, 1]} : vector<32x128xf32> to vector<8x128xf32>
    %c2_22 = arith.constant 2 : index
    %c1_23 = arith.constant 1 : index
    %58 = memref.load %arg4[%c2_22, %c1_23] : memref<3x4xf32, #tpu.memory_space<smem>>
    %59 = vector.broadcast %58 : f32 to vector<8x128xf32>
    %60 = arith.mulf %59, %57 : vector<8x128xf32>
    %61 = arith.addf %56, %60 : vector<8x128xf32>
    %62 = vector.extract_strided_slice %14 {offsets = [16, 0], sizes = [8, 128], strides = [1, 1]} : vector<32x128xf32> to vector<8x128xf32>
    %c2_24 = arith.constant 2 : index
    %c2_25 = arith.constant 2 : index
    %63 = memref.load %arg4[%c2_24, %c2_25] : memref<3x4xf32, #tpu.memory_space<smem>>
    %64 = vector.broadcast %63 : f32 to vector<8x128xf32>
    %65 = arith.mulf %64, %62 : vector<8x128xf32>
    %66 = arith.addf %61, %65 : vector<8x128xf32>
    %67 = vector.extract_strided_slice %14 {offsets = [24, 0], sizes = [8, 128], strides = [1, 1]} : vector<32x128xf32> to vector<8x128xf32>
    %c2_26 = arith.constant 2 : index
    %c3_27 = arith.constant 3 : index
    %68 = memref.load %arg4[%c2_26, %c3_27] : memref<3x4xf32, #tpu.memory_space<smem>>
    %69 = vector.broadcast %68 : f32 to vector<8x128xf32>
    %70 = arith.mulf %69, %67 : vector<8x128xf32>
    %71 = arith.addf %66, %70 : vector<8x128xf32>
    %72 = tpu.concatenate %33, %52, %71 in 0 : vector<8x128xf32>, vector<8x128xf32>, vector<8x128xf32> -> vector<24x128xf32>
    %73 = arith.truncf %72 : vector<24x128xf32> to vector<24x128xbf16>
    %c0_28 = arith.constant 0 : index
    %c0_29 = arith.constant 0 : index
    %74 = vector.load %arg3[%c0_28, %c0_29] : memref<128x128xbf16, #tpu.memory_space<vmem>>, vector<128x128xbf16>
    %cst_30 = arith.constant dense<0.000000e+00> : vector<24x128xf32>
    %75 = tpu.matmul %73, %74, %cst_30 {dimension_numbers = #tpu.dot_dimension_numbers<[1], [0], [0], [1], [0, 0, 1, 1], [], []>} : vector<24x128xbf16>, vector<128x128xbf16>, vector<24x128xf32> -> vector<24x128xf32>
    %c0_31 = arith.constant 0 : index
    %76 = memref.load %arg5[%c0_31] : memref<3xf32, #tpu.memory_space<smem>>
    %77 = vector.broadcast %76 : f32 to vector<8x128xf32>
    %c1_32 = arith.constant 1 : index
    %78 = memref.load %arg5[%c1_32] : memref<3xf32, #tpu.memory_space<smem>>
    %79 = vector.broadcast %78 : f32 to vector<8x128xf32>
    %c2_33 = arith.constant 2 : index
    %80 = memref.load %arg5[%c2_33] : memref<3xf32, #tpu.memory_space<smem>>
    %81 = vector.broadcast %80 : f32 to vector<8x128xf32>
    %82 = tpu.concatenate %77, %79, %81 in 0 : vector<8x128xf32>, vector<8x128xf32>, vector<8x128xf32> -> vector<24x128xf32>
    %83 = arith.addf %75, %82 : vector<24x128xf32>
    %cst_34 = arith.constant 9.99999997E-7 : f32
    %84 = vector.broadcast %cst_34 : f32 to vector<24x128xf32>
    %85 = arith.maximumf %83, %84 : vector<24x128xf32>
    %cst_35 = arith.constant 9.99999997E-7 : f32
    %86 = vector.broadcast %cst_35 : f32 to vector<24x128xf32>
    %87 = arith.addf %85, %86 : vector<24x128xf32>
    %88 = math.log %87 : vector<24x128xf32>
    %cst_36 = arith.constant -5.000000e+00 : f32
    %cst_37 = arith.constant 5.000000e+00 : f32
    %89 = vector.broadcast %cst_36 : f32 to vector<24x128xf32>
    %90 = arith.maximumf %89, %88 : vector<24x128xf32>
    %91 = vector.broadcast %cst_37 : f32 to vector<24x128xf32>
    %92 = arith.minimumf %91, %90 : vector<24x128xf32>
    %93 = vector.shape_cast %92 : vector<24x128xf32> to vector<1x3x8x128xf32>
    %c0_38 = arith.constant 0 : index
    %c0_39 = arith.constant 0 : index
    %c0_40 = arith.constant 0 : index
    %c0_41 = arith.constant 0 : index
    %94 = vector.load %arg6[%c0_38, %c0_39, %c0_40, %c0_41] : memref<1x3x8x128xf32, #tpu.memory_space<vmem>>, vector<1x3x8x128xf32>
    tpu.vector_store %arg6[%c0_38, %c0_39, %c0_40, %c0_41], %93 {strides = array<i32>} : memref<1x3x8x128xf32, #tpu.memory_space<vmem>>, vector<1x3x8x128xf32>,
    return
  }
  func.func @transform_0(%arg0: i32) -> (i32, i32, i32) {
    %c0_i32 = arith.constant 0 : i32
    %c0_i32_0 = arith.constant 0 : i32
    %c0_i32_1 = arith.constant 0 : i32
    return %arg0, %c0_i32, %c0_i32_0 : i32, i32, i32
  }
  func.func @transform_1(%arg0: i32) -> (i32, i32) {
    %c0_i32 = arith.constant 0 : i32
    %c0_i32_0 = arith.constant 0 : i32
    %c0_i32_1 = arith.constant 0 : i32
    return %c0_i32, %c0_i32_0 : i32, i32
  }
  func.func @transform_2(%arg0: i32) -> (i32, i32) {
    %c0_i32 = arith.constant 0 : i32
    %c0_i32_0 = arith.constant 0 : i32
    %c0_i32_1 = arith.constant 0 : i32
    return %c0_i32, %c0_i32_0 : i32, i32
  }
  func.func @transform_3(%arg0: i32) -> (i32, i32) {
    %c0_i32 = arith.constant 0 : i32
    %c0_i32_0 = arith.constant 0 : i32
    %c0_i32_1 = arith.constant 0 : i32
    return %c0_i32, %c0_i32_0 : i32, i32
  }
  func.func @transform_4(%arg0: i32) -> i32 {
    %c0_i32 = arith.constant 0 : i32
    %c0_i32_0 = arith.constant 0 : i32
    return %c0_i32 : i32
  }
  func.func @transform_5(%arg0: i32) -> (i32, i32, i32, i32) {
    %c0_i32 = arith.constant 0 : i32
    %c0_i32_0 = arith.constant 0 : i32
    %c0_i32_1 = arith.constant 0 : i32
    %c0_i32_2 = arith.constant 0 : i32
    return %arg0, %c0_i32, %c0_i32_0, %c0_i32_1 : i32, i32, i32, i32
  }
}

</mosaic_0001>

<llo_original>
// kernel: tpu_custom_call.1
$region0: #{tpu_custom_call.1}
  #allocation0 [shape = 'u32[]', space=smem, size = 0x4, offset = 0x4, fixed_abs, tag = 'smem constant byte address 0x4 - core index']
  #allocation1 [shape = 'u32[144,128]{1,0:T(1,128)}', space=vmem, size = 0x12000, scoped, tag = 'internal scratch']
  %s0 = inlined_call_operand.hbm [shape: bf16[2,32,128], index: 0, kind: input, shape index: {}]
  %s1 = inlined_call_operand.hbm [shape: bf16[256,256], index: 1, kind: input, shape index: {}]
  %s2 = inlined_call_operand.hbm [shape: bf16[128,128], index: 2, kind: input, shape index: {}]
  %s3 = inlined_call_operand.vmem [shape: f32[3,4], index: 3, kind: input, shape index: {}]
  %s4 = inlined_call_operand.vmem [shape: f32[3], index: 4, kind: input, shape index: {}]
  %s5 = inlined_call_operand.hbm [shape: f32[2,3,8,128], index: 5, kind: output, shape index: {}]
  %s6 = sld [smem:[#allocation0]]
  $region73: #{tpu_custom_call.1} parent=0
    _
  %s8 = ssub.s32 1, %s6
  %s9 = scalar_select 0, %s8, %s6
  $region1: #{tpu_custom_call.1} parent=0
    #allocation2 [shape = 'u8[16384]{0}', space=vmem, size = 0x4000, scoped, tag = 'input window, operand 0']
    #allocation3 [shape = 's32[2]{0}', space=sflag, size = 0x8, scoped, tag = 'scoped memory for tpu_custom_call.1']
    #allocation4 [shape = 's32[2]{0}', space=sflag, size = 0x8, scoped, tag = 'scoped memory for tpu_custom_call.1']
    #allocation5 [shape = 's32[2]{0}', space=sflag, size = 0x8, scoped, tag = 'scoped memory for tpu_custom_call.1']
    #allocation6 [shape = 'u8[131072]{0}', space=vmem, size = 0x20000, scoped, tag = 'input window, operand 1, single buffered']
    #allocation7 [shape = 's32[1]{0}', space=sflag, size = 0x4, scoped, tag = 'scoped memory for tpu_custom_call.1']
    #allocation8 [shape = 'u8[32768]{0}', space=vmem, size = 0x8000, scoped, tag = 'input window, operand 2, single buffered']
    #allocation9 [shape = 'u8[2048]{0}', space=smem, size = 0x800, scoped, tag = 'input window, operand 3, single buffered']
    #allocation10 [shape = 'u8[512]{0}', space=smem, size = 0x200, scoped, tag = 'input window, operand 4, single buffered']
    #allocation11 [shape = 's32[1]{0}', space=sflag, size = 0x4, scoped, tag = 'scoped memory for tpu_custom_call.1']
    #allocation12 [shape = 'u8[24576]{0}', space=vmem, size = 0x6000, scoped, tag = 'output window, operand 0']
    %10 = vsyncpa [#allocation3], 0
    %s11 = scalar_lea.sflag [#allocation3], 1
    %12 = vsyncpa %s11, 0
    %13 = vsyncpa [#allocation7], 0
    %14 = vsyncpa [#allocation5], 0
    %15 = vsyncpa [#allocation11], 0
    %16 = vsyncpa [#allocation4], 0
    %s17 = scalar_lea.sflag [#allocation4], 1
    %18 = vsyncpa %s17, 0
    loop: start=0, step=1, limit=4
    $region2: #{tpu_custom_call.1} parent=1 // loop_pre_header
      _
    $region3: #{tpu_custom_call.1} parent=1 // loop_header
      %s20 = sphi 0, %s24
      %p21 = scmp.ge.s32.totalorder %s20, 4
      %s30 = sphi 0, %s32
      %s33 = sphi 0, %s30
      %s34 = sphi 0, %s33
      %s50 = sphi 0, %s34
      %s54 = sphi 0, %s54
      %s56 = sphi 0, %s54
      %s57 = sphi 0, %s56
      %s71 = sphi 0, %s57
      %s75 = sphi 0, %s75
      %s77 = sphi 0, %s75
      %s78 = sphi 0, %s77
      %s92 = sphi 0, %s78
      %s96 = sphi 0, %s96
      %s98 = sphi 0, %s96
      %s99 = sphi 0, %s98
      %s113 = sphi 0, %s99
      %s117 = sphi 0, %s117
      %s119 = sphi 0, %s117
      %s120 = sphi 0, %s119
      %s134 = sphi 0, %s120
      %s140 = sphi 0, %s142
      %s143 = sphi 0, %s140
      %s144 = sphi 0, %s143
      %s160 = sphi 0, %s144
    $region4: #{tpu_custom_call.1} parent=1 // loop_header_branch
      %23 = sbr.rel (%p21) target = $region8
    $region5: #{tpu_custom_call.1} parent=1 // loop_body
      %s25 = ssub.s32 %s20, 1
      %s26 = ssub.s32 %s20, 2
      %s27 = sadd.s32 %s20, 1
      %s28 = ssub.s32 %s20, %s27
      %p29 = scmp.eq.s32.totalorder %s28, 0
      %s31 = sadd.s32 %s30, 1
      %s32 = scalar_select %p29, %s30, %s31
      %p35 = pneg %p29
      %p36 = scmp.eq.s32.totalorder %s20, 1
      %p37 = por %p35, %p36
      %p38 = scmp.ne.s32.totalorder %s30, %s33
      %p39 = scmp.eq.s32.totalorder %s20, 0
      %p40 = por %p38, %p39
      %p41 = scmp.ne.s32.totalorder %s30, %s33
      %p42 = scmp.eq.s32.totalorder %s25, 1
      %p43 = por %p41, %p42
      %p44 = scmp.ne.s32.totalorder %s33, %s34
      %p45 = scmp.eq.s32.totalorder %s25, 0
      %p46 = por %p44, %p45
      %p47 = scmp.ne.s32.totalorder %s33, %s34
      %p48 = scmp.eq.s32.totalorder %s26, 1
      %p49 = por %p47, %p48
      %p51 = scmp.ne.s32.totalorder %s34, %s50
      %p52 = scmp.eq.s32.totalorder %s26, 0
      %p53 = por %p51, %p52
      %s55 = sadd.s32 %s54, 1
      %p58 = scmp.eq.s32.totalorder %s20, 1
      %p59 = scmp.ne.s32.totalorder %s54, %s56
      %p60 = scmp.eq.s32.totalorder %s20, 0
      %p61 = por %p59, %p60
      %p62 = scmp.ne.s32.totalorder %s54, %s56
      %p63 = scmp.eq.s32.totalorder %s25, 1
      %p64 = por %p62, %p63
      %p65 = scmp.ne.s32.totalorder %s56, %s57
      %p66 = scmp.eq.s32.totalorder %s25, 0
      %p67 = por %p65, %p66
      %p68 = scmp.ne.s32.totalorder %s56, %s57
      %p69 = scmp.eq.s32.totalorder %s26, 1
      %p70 = por %p68, %p69
      %p72 = scmp.ne.s32.totalorder %s57, %s71
      %p73 = scmp.eq.s32.totalorder %s26, 0
      %p74 = por %p72, %p73
      %s76 = sadd.s32 %s75, 1
      %p79 = scmp.eq.s32.totalorder %s20, 1
      %p80 = scmp.ne.s32.totalorder %s75, %s77
      %p81 = scmp.eq.s32.totalorder %s20, 0
      %p82 = por %p80, %p81
      %p83 = scmp.ne.s32.totalorder %s75, %s77
      %p84 = scmp.eq.s32.totalorder %s25, 1
      %p85 = por %p83, %p84
      %p86 = scmp.ne.s32.totalorder %s77, %s78
      %p87 = scmp.eq.s32.totalorder %s25, 0
      %p88 = por %p86, %p87
      %p89 = scmp.ne.s32.totalorder %s77, %s78
      %p90 = scmp.eq.s32.totalorder %s26, 1
      %p91 = por %p89, %p90
      %p93 = scmp.ne.s32.totalorder %s78, %s92
      %p94 = scmp.eq.s32.totalorder %s26, 0
      %p95 = por %p93, %p94
      %s97 = sadd.s32 %s96, 1
      %p100 = scmp.eq.s32.totalorder %s20, 1
      %p101 = scmp.ne.s32.totalorder %s96, %s98
      %p102 = scmp.eq.s32.totalorder %s20, 0
      %p103 = por %p101, %p102
      %p104 = scmp.ne.s32.totalorder %s96, %s98
      %p105 = scmp.eq.s32.totalorder %s25, 1
      %p106 = por %p104, %p105
      %p107 = scmp.ne.s32.totalorder %s98, %s99
      %p108 = scmp.eq.s32.totalorder %s25, 0
      %p109 = por %p107, %p108
      %p110 = scmp.ne.s32.totalorder %s98, %s99
      %p111 = scmp.eq.s32.totalorder %s26, 1
      %p112 = por %p110, %p111
      %p114 = scmp.ne.s32.totalorder %s99, %s113
      %p115 = scmp.eq.s32.totalorder %s26, 0
      %p116 = por %p114, %p115
      %s118 = sadd.s32 %s117, 1
      %p121 = scmp.eq.s32.totalorder %s20, 1
      %p122 = scmp.ne.s32.totalorder %s117, %s119
      %p123 = scmp.eq.s32.totalorder %s20, 0
      %p124 = por %p122, %p123
      %p125 = scmp.ne.s32.totalorder %s117, %s119
      %p126 = scmp.eq.s32.totalorder %s25, 1
      %p127 = por %p125, %p126
      %p128 = scmp.ne.s32.totalorder %s119, %s120
      %p129 = scmp.eq.s32.totalorder %s25, 0
      %p130 = por %p128, %p129
      %p131 = scmp.ne.s32.totalorder %s119, %s120
      %p132 = scmp.eq.s32.totalorder %s26, 1
      %p133 = por %p131, %p132
      %p135 = scmp.ne.s32.totalorder %s120, %s134
      %p136 = scmp.eq.s32.totalorder %s26, 0
      %p137 = por %p135, %p136
      %s138 = ssub.s32 %s20, %s27
      %p139 = scmp.eq.s32.totalorder %s138, 0
      %s141 = sadd.s32 %s140, 1
      %s142 = scalar_select %p139, %s140, %s141
      %p145 = pneg %p139
      %p146 = scmp.eq.s32.totalorder %s20, 1
      %p147 = por %p145, %p146
      %p148 = scmp.ne.s32.totalorder %s140, %s143
      %p149 = scmp.eq.s32.totalorder %s20, 0
      %p150 = por %p148, %p149
      %p151 = scmp.ne.s32.totalorder %s140, %s143
      %p152 = scmp.eq.s32.totalorder %s25, 1
      %p153 = por %p151, %p152
      %p154 = scmp.ne.s32.totalorder %s143, %s144
      %p155 = scmp.eq.s32.totalorder %s25, 0
      %p156 = por %p154, %p155
      %p157 = scmp.ne.s32.totalorder %s143, %s144
      %p158 = scmp.eq.s32.totalorder %s26, 1
      %p159 = por %p157, %p158
      %p161 = scmp.ne.s32.totalorder %s144, %s160
      %p162 = scmp.eq.s32.totalorder %s26, 0
      %p163 = por %p161, %p162
      %p164 = scmp.le.s32.totalorder 1, %s20
      %p165 = scmp.lt.s32.totalorder %s20, 3
      %p166 = pnand %p164, %p165
      %p167 = pneg %p166
      // Predicated region
      $region9: #{tpu_custom_call.1} parent=5 // pred_check
        _
      $region10: #{tpu_custom_call.1} parent=5 // pred_check_branch
        %169 = sbr.rel (%p166) target = $region12
      $region11: #{tpu_custom_call.1} parent=5 // pred_region
        %s170 = ssub.s32 %s20, 1
        // Predicated region
        $region13: #{tpu_custom_call.1} parent=11 // pred_check
          %p171 = pneg %p67
        $region14: #{tpu_custom_call.1} parent=11 // pred_check_branch
          %173 = sbr.rel (%p171) target = $region16
        $region15: #{tpu_custom_call.1} parent=11 // pred_region
          %s175 = ssub.s32 4096, 4096
          %176 = vsyncadd [#allocation7], %s175
          %s177 = sshll.u32 [#allocation6], 4
          %s178 = int_to_ptr.vmem [resolvable:$true] %s177
          %183 = dma.hbm_to_vmem [thread:$0]  %s1, 4096, %s178, [#allocation7], 128, 128, 8
        $region16: #{tpu_custom_call.1} parent=11 // pred_fallthru
          _
        // Predicated region
        $region17: #{tpu_custom_call.1} parent=11 // pred_check
          %p184 = pneg %p88
        $region18: #{tpu_custom_call.1} parent=11 // pred_check_branch
          %186 = sbr.rel (%p184) target = $region20
        $region19: #{tpu_custom_call.1} parent=11 // pred_region
          %s188 = ssub.s32 1024, 1024
          %189 = vsyncadd [#allocation7], %s188
          %s190 = sshll.u32 [#allocation8], 4
          %s191 = int_to_ptr.vmem [resolvable:$true] %s190
          %196 = dma.hbm_to_vmem [thread:$0]  %s2, 1024, %s191, [#allocation7], 64, 64, 4
        $region20: #{tpu_custom_call.1} parent=11 // pred_fallthru
          _
        // Predicated region
        $region21: #{tpu_custom_call.1} parent=11 // pred_check
          %p197 = pneg %p109
        $region22: #{tpu_custom_call.1} parent=11 // pred_check_branch
          %199 = sbr.rel (%p197) target = $region24
        $region23: #{tpu_custom_call.1} parent=11 // pred_region
          %s201 = ssub.s32 64, 64
          %202 = vsyncadd [#allocation5], %s201
          %s204 = sshll.u32 %s3, 4
          %s205 = int_to_ptr.vmem [resolvable:$true] %s204
          %207 = dma.vmem_to_smem %s205, 64, [#allocation9], [#allocation5]
        $region24: #{tpu_custom_call.1} parent=11 // pred_fallthru
          _
        // Predicated region
        $region25: #{tpu_custom_call.1} parent=11 // pred_check
          %p208 = pneg %p130
        $region26: #{tpu_custom_call.1} parent=11 // pred_check_branch
          %210 = sbr.rel (%p208) target = $region28
        $region27: #{tpu_custom_call.1} parent=11 // pred_region
          %s212 = ssub.s32 16, 16
          %213 = vsyncadd [#allocation11], %s212
          %s215 = sshll.u32 %s4, 4
          %s216 = int_to_ptr.vmem [resolvable:$true] %s215
          %218 = dma.vmem_to_smem %s216, 16, [#allocation10], [#allocation11]
        $region28: #{tpu_custom_call.1} parent=11 // pred_fallthru
          _
      $region12: #{tpu_custom_call.1} parent=5 // pred_fallthru
        _
      %p219 = scmp.lt.s32.totalorder %s20, 2
      // Predicated region
      $region29: #{tpu_custom_call.1} parent=5 // pred_check
        %p220 = pneg %p219
      $region30: #{tpu_custom_call.1} parent=5 // pred_check_branch
        %222 = sbr.rel (%p220) target = $region32
      $region31: #{tpu_custom_call.1} parent=5 // pred_region
        // Predicated region
        $region33: #{tpu_custom_call.1} parent=31 // pred_check
          %p223 = pneg %p40
        $region34: #{tpu_custom_call.1} parent=31 // pred_check_branch
          %225 = sbr.rel (%p223) target = $region36
        $region35: #{tpu_custom_call.1} parent=31 // pred_region
          %s226 = sand.u32 %s30, 1
          %s227 = scalar_lea.sflag [#allocation3], %s226
          %s228 = sand.u32 %s30, 1
          %s229 = smul.addr %s228, 16
          %s230 = scalar_lea.vmem [#allocation2], %s229
          %s232 = ssub.s32 256, 256
          %233 = vsyncadd %s227, %s232
          %s234 = smul.addr %s20, 4
          %s235 = smul.addr %s234, 64
          %s236 = scalar_lea.hbm %s0, %s235
          %s237 = sshll.u32 %s230, 4
          %s238 = int_to_ptr.vmem [resolvable:$true] %s237
          %243 = dma.hbm_to_vmem [thread:$0]  %s236, 256, %s238, %s227, 64, 64, 4
        $region36: #{tpu_custom_call.1} parent=31 // pred_fallthru
          _
      $region32: #{tpu_custom_call.1} parent=5 // pred_fallthru
        _
      %p244 = scmp.le.s32.totalorder 1, %s20
      %p245 = scmp.lt.s32.totalorder %s20, 3
      %p246 = pnand %p244, %p245
      %p247 = pneg %p246
      // Predicated region
      $region37: #{tpu_custom_call.1} parent=5 // pred_check
        _
      $region38: #{tpu_custom_call.1} parent=5 // pred_check_branch
        %249 = sbr.rel (%p246) target = $region40
      $region39: #{tpu_custom_call.1} parent=5 // pred_region
        %s250 = ssub.s32 %s20, 1
        %s251 = sand.u32 %s33, 1
        %s252 = scalar_lea.sflag [#allocation3], %s251
        %s253 = sand.u32 %s33, 1
        %s254 = smul.addr %s253, 16
        %s255 = scalar_lea.vmem [#allocation2], %s254
        // Predicated region
        $region41: #{tpu_custom_call.1} parent=39 // pred_check
          %p256 = pneg %p46
        $region42: #{tpu_custom_call.1} parent=39 // pred_check_branch
          %258 = sbr.rel (%p256) target = $region44
        $region43: #{tpu_custom_call.1} parent=39 // pred_region
          %259 = dma.done %s252, 256
        $region44: #{tpu_custom_call.1} parent=39 // pred_fallthru
          _
        // Predicated region
        $region45: #{tpu_custom_call.1} parent=39 // pred_check
          %p260 = pneg %p67
        $region46: #{tpu_custom_call.1} parent=39 // pred_check_branch
          %262 = sbr.rel (%p260) target = $region48
        $region47: #{tpu_custom_call.1} parent=39 // pred_region
          %263 = dma.done [#allocation7], 4096
        $region48: #{tpu_custom_call.1} parent=39 // pred_fallthru
          _
        // Predicated region
        $region49: #{tpu_custom_call.1} parent=39 // pred_check
          %p264 = pneg %p88
        $region50: #{tpu_custom_call.1} parent=39 // pred_check_branch
          %266 = sbr.rel (%p264) target = $region52
        $region51: #{tpu_custom_call.1} parent=39 // pred_region
          %267 = dma.done [#allocation7], 1024
        $region52: #{tpu_custom_call.1} parent=39 // pred_fallthru
          _
        // Predicated region
        $region53: #{tpu_custom_call.1} parent=39 // pred_check
          %p268 = pneg %p109
        $region54: #{tpu_custom_call.1} parent=39 // pred_check_branch
          %270 = sbr.rel (%p268) target = $region56
        $region55: #{tpu_custom_call.1} parent=39 // pred_region
          %271 = dma.done [#allocation5], 64
        $region56: #{tpu_custom_call.1} parent=39 // pred_fallthru
          _
        // Predicated region
        $region57: #{tpu_custom_call.1} parent=39 // pred_check
          %p272 = pneg %p130
        $region58: #{tpu_custom_call.1} parent=39 // pred_check_branch
          %274 = sbr.rel (%p272) target = $region60
        $region59: #{tpu_custom_call.1} parent=39 // pred_region
          %275 = dma.done [#allocation11], 16
        $region60: #{tpu_custom_call.1} parent=39 // pred_fallthru
          _
        %276 = sfence
        %s277 = sand.u32 %s33, 1
        %s278 = scalar_lea.sflag [#allocation3], %s277
        %s279 = sand.u32 %s33, 1
        %s280 = smul.addr %s279, 16
        %s281 = scalar_lea.vmem [#allocation2], %s280
        %p282 = pneg %p46
        %p283 = pneg %p43
        %p284 = pneg %p67
        %p285 = pneg %p64
        %p286 = pneg %p88
        %p287 = pneg %p85
        %p288 = pneg %p109
        %p289 = pneg %p106
        %p290 = pneg %p130
        %p291 = pneg %p127
        %p292 = pneg %p156
        %p293 = pneg %p153
        %s294 = sand.u32 %s143, 1
        %s295 = scalar_lea.sflag [#allocation4], %s294
        %s296 = sand.u32 %s143, 1
        %s297 = smul.addr %s296, 24
        %s298 = scalar_lea.vmem [#allocation12], %s297
        %v300 = vld [vmem:[%s255] sm:$0xf]
        %v301 = vld [vmem:[%s255 + $0x4] sm:$0xf]
        %v302 = vld [vmem:[%s255 + $0x8] sm:$0xf]
        %v303 = vld [vmem:[%s255 + $0xc] sm:$0xf]
        %v304 = vld [vmem:[#allocation6] sm:$0xff]
        %v305 = vld [vmem:[#allocation6 + $0x8] sm:$0xff]
        %v306 = vld [vmem:[#allocation6 + $0x10] sm:$0xff]
        %v307 = vld [vmem:[#allocation6 + $0x18] sm:$0xff]
        %v308 = vld [vmem:[#allocation6 + $0x20] sm:$0xff]
        %v309 = vld [vmem:[#allocation6 + $0x28] sm:$0xff]
        %v310 = vld [vmem:[#allocation6 + $0x30] sm:$0xff]
        %v311 = vld [vmem:[#allocation6 + $0x38] sm:$0xff]
        %v312 = vld [vmem:[#allocation6 + $0x40] sm:$0xff]
        %v313 = vld [vmem:[#allocation6 + $0x48] sm:$0xff]
        %v314 = vld [vmem:[#allocation6 + $0x50] sm:$0xff]
        %v315 = vld [vmem:[#allocation6 + $0x58] sm:$0xff]
        %v316 = vld [vmem:[#allocation6 + $0x60] sm:$0xff]
        %v317 = vld [vmem:[#allocation6 + $0x68] sm:$0xff]
        %v318 = vld [vmem:[#allocation6 + $0x70] sm:$0xff]
        %v319 = vld [vmem:[#allocation6 + $0x78] sm:$0xff]
        %v320 = vld [vmem:[#allocation6 + $0x80] sm:$0xff]
        %v321 = vld [vmem:[#allocation6 + $0x88] sm:$0xff]
        %v322 = vld [vmem:[#allocation6 + $0x90] sm:$0xff]
        %v323 = vld [vmem:[#allocation6 + $0x98] sm:$0xff]
        %v324 = vld [vmem:[#allocation6 + $0xa0] sm:$0xff]
        %v325 = vld [vmem:[#allocation6 + $0xa8] sm:$0xff]
        %v326 = vld [vmem:[#allocation6 + $0xb0] sm:$0xff]
        %v327 = vld [vmem:[#allocation6 + $0xb8] sm:$0xff]
        %v328 = vld [vmem:[#allocation6 + $0xc0] sm:$0xff]
        %v329 = vld [vmem:[#allocation6 + $0xc8] sm:$0xff]
        %v330 = vld [vmem:[#allocation6 + $0xd0] sm:$0xff]
        %v331 = vld [vmem:[#allocation6 + $0xd8] sm:$0xff]
        %v332 = vld [vmem:[#allocation6 + $0xe0] sm:$0xff]
        %v333 = vld [vmem:[#allocation6 + $0xe8] sm:$0xff]
        %v334 = vld [vmem:[#allocation6 + $0xf0] sm:$0xff]
        %v335 = vld [vmem:[#allocation6 + $0xf8] sm:$0xff]
        %v340 = vunpack.c.l.b16 %v300
        %v341 = vunpack.c.l.b16 %v301
        %v342 = vunpack.c.l.b16 %v302
        %v343 = vunpack.c.l.b16 %v303
        %v344 = vpack.c.b16 %v341, %v340
        %v345 = vpack.c.b16 %v343, %v342
        %v364 = vunpack.c.l.b16 %v320
        %v365 = vunpack.c.h.b16 %v320
        %v366 = vunpack.c.l.b16 %v321
        %v367 = vunpack.c.h.b16 %v321
        %v368 = vunpack.c.l.b16 %v322
        %v369 = vunpack.c.h.b16 %v322
        %v370 = vunpack.c.l.b16 %v323
        %v371 = vunpack.c.h.b16 %v323
        %v372 = vunpack.c.l.b16 %v324
        %v373 = vunpack.c.h.b16 %v324
        %v374 = vunpack.c.l.b16 %v325
        %v375 = vunpack.c.h.b16 %v325
        %v376 = vunpack.c.l.b16 %v326
        %v377 = vunpack.c.h.b16 %v326
        %v378 = vunpack.c.l.b16 %v327
        %v379 = vunpack.c.h.b16 %v327
        %v380 = vunpack.c.l.b16 %v328
        %v381 = vunpack.c.h.b16 %v328
        %v382 = vunpack.c.l.b16 %v329
        %v383 = vunpack.c.h.b16 %v329
        %v384 = vunpack.c.l.b16 %v330
        %v385 = vunpack.c.h.b16 %v330
        %v386 = vunpack.c.l.b16 %v331
        %v387 = vunpack.c.h.b16 %v331
        %v388 = vunpack.c.l.b16 %v332
        %v389 = vunpack.c.h.b16 %v332
        %v390 = vunpack.c.l.b16 %v333
        %v391 = vunpack.c.h.b16 %v333
        %v392 = vunpack.c.l.b16 %v334
        %v393 = vunpack.c.h.b16 %v334
        %v394 = vunpack.c.l.b16 %v335
        %v395 = vunpack.c.h.b16 %v335
        %v396 = vpack.c.b16 %v366, %v364
        %v397 = vpack.c.b16 %v367, %v365
        %v398 = vpack.c.b16 %v370, %v368
        %v399 = vpack.c.b16 %v371, %v369
        %v400 = vpack.c.b16 %v374, %v372
        %v401 = vpack.c.b16 %v375, %v373
        %v402 = vpack.c.b16 %v378, %v376
        %v403 = vpack.c.b16 %v379, %v377
        %v404 = vpack.c.b16 %v382, %v380
        %v405 = vpack.c.b16 %v383, %v381
        %v406 = vpack.c.b16 %v386, %v384
        %v407 = vpack.c.b16 %v387, %v385
        %v408 = vpack.c.b16 %v390, %v388
        %v409 = vpack.c.b16 %v391, %v389
        %v410 = vpack.c.b16 %v394, %v392
        %v411 = vpack.c.b16 %v395, %v393
        %428 = vmatprep.subr.bf16.mxu0 %v411
        %429 = vmatpush1.bf16.msra.mxu0 %v410
        %430 = vmatprep.subr.bf16.mxu0 %v409
        %431 = vmatpush1.bf16.msra.mxu0 %v408
        %432 = vmatprep.subr.bf16.mxu0 %v407
        %433 = vmatpush1.bf16.msra.mxu0 %v406
        %434 = vmatprep.subr.bf16.mxu0 %v405
        %435 = vmatpush1.bf16.msra.mxu0 %v404
        %436 = vmatprep.subr.bf16.mxu0 %v403
        %437 = vmatpush1.bf16.msra.mxu0 %v402
        %438 = vmatprep.subr.bf16.mxu0 %v401
        %439 = vmatpush1.bf16.msra.mxu0 %v400
        %440 = vmatprep.subr.bf16.mxu0 %v399
        %441 = vmatpush1.bf16.msra.mxu0 %v398
        %442 = vmatprep.subr.bf16.mxu0 %v397
        %443 = vmatpush1.bf16.msra.mxu0 %v396
        %444 = vmatprep.subr.bf16.mxu0 0
        %445 = vmatpush2.bf16.msra.mxu0 0
        %446 = vmatprep.subr.bf16.mxu0 0
        %447 = vmatpush2.bf16.msra.mxu0 0
        %448 = vmatprep.subr.bf16.mxu0 0
        %449 = vmatpush2.bf16.msra.mxu0 0
        %450 = vmatprep.subr.bf16.mxu0 0
        %451 = vmatpush2.bf16.msra.mxu0 0
        %452 = vmatprep.subr.bf16.mxu0 0
        %453 = vmatpush2.bf16.msra.mxu0 0
        %454 = vmatprep.subr.bf16.mxu0 0
        %455 = vmatpush2.bf16.msra.mxu0 0
        %456 = vmatprep.subr.bf16.mxu0 0
        %457 = vmatpush2.bf16.msra.mxu0 0
        %458 = vmatprep.subr.bf16.mxu0 0
        %459 = vmatpush2.bf16.msra.mxu0 0
        %460 = vmatprep.mubr.bf16.mxu0 0
        %461 = vmatmul.mubr.bf16.gmra.mxu0 %v344
        %v462 = vpop.f32.mrf.mxu0
        %v463 = vadd.f32 0.0, %v462
        %v464 = vpop.f32.mrf.mxu0
        %v465 = vadd.f32 0.0, %v464
        %v466 = vpop.f32.mrf.mxu0
        %v467 = vadd.f32 0.0, %v466
        %v468 = vpop.f32.mrf.mxu0
        %v469 = vadd.f32 0.0, %v468
        %470 = vmatprep.mubr.bf16.mxu0 0
        %471 = vmatmul.mubr.bf16.gmra.mxu0 %v345
        %v472 = vpop.f32.mrf.mxu0
        %v473 = vadd.f32 0.0, %v472
        %v474 = vpop.f32.mrf.mxu0
        %v475 = vadd.f32 0.0, %v474
        %v476 = vpop.f32.mrf.mxu0
        %v477 = vadd.f32 0.0, %v476
        %v478 = vpop.f32.mrf.mxu0
        %v479 = vadd.f32 0.0, %v478
        %480 = vdwg.mxu0
        %vm489 = vcmask 1046528
        %v490 = vrot.slane %v463, 1
        %v491 = vrot.slane %v467, 1
        %v492 = vsel %vm489, %v490, %v491
        %v493 = vrot.slane %v465, 1
        %v494 = vrot.slane %v469, 1
        %v495 = vsel %vm489, %v493, %v494
        %v496 = vrot.slane %v473, 1
        %v497 = vsel %vm489, %v491, %v496
        %v498 = vrot.slane %v475, 1
        %v499 = vsel %vm489, %v494, %v498
        %v500 = vrot.slane %v477, 1
        %v501 = vsel %vm489, %v496, %v500
        %v502 = vrot.slane %v479, 1
        %v503 = vsel %vm489, %v498, %v502
        %v512 = vsel %vm489, %v500, 0.0
        %v513 = vsel %vm489, %v502, 0.0
        %v530 = vunpack.c.l.b16 %v304
        %v531 = vunpack.c.h.b16 %v304
        %v532 = vunpack.c.l.b16 %v305
        %v533 = vunpack.c.h.b16 %v305
        %v534 = vunpack.c.l.b16 %v306
        %v535 = vunpack.c.h.b16 %v306
        %v536 = vunpack.c.l.b16 %v307
        %v537 = vunpack.c.h.b16 %v307
        %v538 = vunpack.c.l.b16 %v308
        %v539 = vunpack.c.h.b16 %v308
        %v540 = vunpack.c.l.b16 %v309
        %v541 = vunpack.c.h.b16 %v309
        %v542 = vunpack.c.l.b16 %v310
        %v543 = vunpack.c.h.b16 %v310
        %v544 = vunpack.c.l.b16 %v311
        %v545 = vunpack.c.h.b16 %v311
        %v546 = vunpack.c.l.b16 %v312
        %v547 = vunpack.c.h.b16 %v312
        %v548 = vunpack.c.l.b16 %v313
        %v549 = vunpack.c.h.b16 %v313
        %v550 = vunpack.c.l.b16 %v314
        %v551 = vunpack.c.h.b16 %v314
        %v552 = vunpack.c.l.b16 %v315
        %v553 = vunpack.c.h.b16 %v315
        %v554 = vunpack.c.l.b16 %v316
        %v555 = vunpack.c.h.b16 %v316
        %v556 = vunpack.c.l.b16 %v317
        %v557 = vunpack.c.h.b16 %v317
        %v558 = vunpack.c.l.b16 %v318
        %v559 = vunpack.c.h.b16 %v318
        %v560 = vunpack.c.l.b16 %v319
        %v561 = vunpack.c.h.b16 %v319
        %v562 = vpack.c.b16 %v532, %v530
        %v563 = vpack.c.b16 %v533, %v531
        %v564 = vpack.c.b16 %v536, %v534
        %v565 = vpack.c.b16 %v537, %v535
        %v566 = vpack.c.b16 %v540, %v538
        %v567 = vpack.c.b16 %v541, %v539
        %v568 = vpack.c.b16 %v544, %v542
        %v569 = vpack.c.b16 %v545, %v543
        %v570 = vpack.c.b16 %v548, %v546
        %v571 = vpack.c.b16 %v549, %v547
        %v572 = vpack.c.b16 %v552, %v550
        %v573 = vpack.c.b16 %v553, %v551
        %v574 = vpack.c.b16 %v556, %v554
        %v575 = vpack.c.b16 %v557, %v555
        %v576 = vpack.c.b16 %v560, %v558
        %v577 = vpack.c.b16 %v561, %v559
        %594 = vmatprep.subr.bf16.mxu0 %v577
        %595 = vmatpush1.bf16.msra.mxu0 %v576
        %596 = vmatprep.subr.bf16.mxu0 %v575
        %597 = vmatpush1.bf16.msra.mxu0 %v574
        %598 = vmatprep.subr.bf16.mxu0 %v573
        %599 = vmatpush1.bf16.msra.mxu0 %v572
        %600 = vmatprep.subr.bf16.mxu0 %v571
        %601 = vmatpush1.bf16.msra.mxu0 %v570
        %602 = vmatprep.subr.bf16.mxu0 %v569
        %603 = vmatpush1.bf16.msra.mxu0 %v568
        %604 = vmatprep.subr.bf16.mxu0 %v567
        %605 = vmatpush1.bf16.msra.mxu0 %v566
        %606 = vmatprep.subr.bf16.mxu0 %v565
        %607 = vmatpush1.bf16.msra.mxu0 %v564
        %608 = vmatprep.subr.bf16.mxu0 %v563
        %609 = vmatpush1.bf16.msra.mxu0 %v562
        %610 = vmatprep.subr.bf16.mxu0 0
        %611 = vmatpush2.bf16.msra.mxu0 0
        %612 = vmatprep.subr.bf16.mxu0 0
        %613 = vmatpush2.bf16.msra.mxu0 0
        %614 = vmatprep.subr.bf16.mxu0 0
        %615 = vmatpush2.bf16.msra.mxu0 0
        %616 = vmatprep.subr.bf16.mxu0 0
        %617 = vmatpush2.bf16.msra.mxu0 0
        %618 = vmatprep.subr.bf16.mxu0 0
        %619 = vmatpush2.bf16.msra.mxu0 0
        %620 = vmatprep.subr.bf16.mxu0 0
        %621 = vmatpush2.bf16.msra.mxu0 0
        %622 = vmatprep.subr.bf16.mxu0 0
        %623 = vmatpush2.bf16.msra.mxu0 0
        %624 = vmatprep.subr.bf16.mxu0 0
        %625 = vmatpush2.bf16.msra.mxu0 0
        %626 = vmatprep.mubr.bf16.mxu0 0
        %627 = vmatmul.mubr.bf16.gmra.mxu0 %v344
        %v628 = vpop.f32.mrf.mxu0
        %v629 = vadd.f32 %v492, %v628
        %v630 = vpop.f32.mrf.mxu0
        %v631 = vadd.f32 %v495, %v630
        %v632 = vpop.f32.mrf.mxu0
        %v633 = vadd.f32 %v497, %v632
        %v634 = vpop.f32.mrf.mxu0
        %v635 = vadd.f32 %v499, %v634
        %636 = vmatprep.mubr.bf16.mxu0 0
        %637 = vmatmul.mubr.bf16.gmra.mxu0 %v345
        %v638 = vpop.f32.mrf.mxu0
        %v639 = vadd.f32 %v501, %v638
        %v640 = vpop.f32.mrf.mxu0
        %v641 = vadd.f32 %v503, %v640
        %v642 = vpop.f32.mrf.mxu0
        %v643 = vadd.f32 %v512, %v642
        %v644 = vpop.f32.mrf.mxu0
        %v645 = vadd.f32 %v513, %v644
        %646 = vdwg.mxu0
        %v647 = vmul.f32 %v629, %v629
        %v648 = vmul.f32 %v633, %v633
        %v649 = vmul.f32 %v639, %v639
        %v650 = vmul.f32 %v643, %v643
        %v651 = vmul.f32 %v631, %v631
        %v652 = vmul.f32 %v635, %v635
        %v653 = vmul.f32 %v641, %v641
        %v654 = vmul.f32 %v645, %v645
        %v655 = vadd.f32 %v647, %v651
        %v656 = vadd.f32 %v648, %v652
        %v657 = vadd.f32 %v649, %v653
        %v658 = vadd.f32 %v650, %v654
        %s659 = sld [smem:[#allocation9]]
        %v660 = vstv %s659
        %v661 = vmul.f32 %v660, %v655
        %s662 = sld [smem:[#allocation9 + $0x1]]
        %v663 = vstv %s662
        %v664 = vmul.f32 %v663, %v656
        %v665 = vadd.f32 %v661, %v664
        %s666 = sld [smem:[#allocation9 + $0x2]]
        %v667 = vstv %s666
        %v668 = vmul.f32 %v667, %v657
        %v669 = vadd.f32 %v665, %v668
        %s670 = sld [smem:[#allocation9 + $0x3]]
        %v671 = vstv %s670
        %v672 = vmul.f32 %v671, %v658
        %v673 = vadd.f32 %v669, %v672
        %s674 = sld [smem:[#allocation9 + $0x80]]
        %v675 = vstv %s674
        %v676 = vmul.f32 %v675, %v655
        %s677 = sld [smem:[#allocation9 + $0x81]]
        %v678 = vstv %s677
        %v679 = vmul.f32 %v678, %v656
        %v680 = vadd.f32 %v676, %v679
        %s681 = sld [smem:[#allocation9 + $0x82]]
        %v682 = vstv %s681
        %v683 = vmul.f32 %v682, %v657
        %v684 = vadd.f32 %v680, %v683
        %s685 = sld [smem:[#allocation9 + $0x83]]
        %v686 = vstv %s685
        %v687 = vmul.f32 %v686, %v658
        %v688 = vadd.f32 %v684, %v687
        %s689 = sld [smem:[#allocation9 + $0x100]]
        %v690 = vstv %s689
        %v691 = vmul.f32 %v690, %v655
        %s692 = sld [smem:[#allocation9 + $0x101]]
        %v693 = vstv %s692
        %v694 = vmul.f32 %v693, %v656
        %v695 = vadd.f32 %v691, %v694
        %s696 = sld [smem:[#allocation9 + $0x102]]
        %v697 = vstv %s696
        %v698 = vmul.f32 %v697, %v657
        %v699 = vadd.f32 %v695, %v698
        %s700 = sld [smem:[#allocation9 + $0x103]]
        %v701 = vstv %s700
        %v702 = vmul.f32 %v701, %v658
        %v703 = vadd.f32 %v699, %v702
        %v704 = vpack.c.bf16 %v688, %v673
        %v705 = vpack.c.bf16 %v703, %v703
        %v706 = vld [vmem:[#allocation8] sm:$0xf]
        %v707 = vld [vmem:[#allocation8 + $0x4] sm:$0xf]
        %v708 = vld [vmem:[#allocation8 + $0x8] sm:$0xf]
        %v709 = vld [vmem:[#allocation8 + $0xc] sm:$0xf]
        %v710 = vld [vmem:[#allocation8 + $0x10] sm:$0xf]
        %v711 = vld [vmem:[#allocation8 + $0x14] sm:$0xf]
        %v712 = vld [vmem:[#allocation8 + $0x18] sm:$0xf]
        %v713 = vld [vmem:[#allocation8 + $0x1c] sm:$0xf]
        %v714 = vld [vmem:[#allocation8 + $0x20] sm:$0xf]
        %v715 = vld [vmem:[#allocation8 + $0x24] sm:$0xf]
        %v716 = vld [vmem:[#allocation8 + $0x28] sm:$0xf]
        %v717 = vld [vmem:[#allocation8 + $0x2c] sm:$0xf]
        %v718 = vld [vmem:[#allocation8 + $0x30] sm:$0xf]
        %v719 = vld [vmem:[#allocation8 + $0x34] sm:$0xf]
        %v720 = vld [vmem:[#allocation8 + $0x38] sm:$0xf]
        %v721 = vld [vmem:[#allocation8 + $0x3c] sm:$0xf]
        %s722 = sld [smem:[#allocation10]]
        %v723 = vstv %s722
        %s724 = sld [smem:[#allocation10 + $0x1]]
        %v725 = vstv %s724
        %s726 = sld [smem:[#allocation10 + $0x2]]
        %v727 = vstv %s726
        %v744 = vunpack.c.l.b16 %v706
        %v745 = vunpack.c.l.b16 %v707
        %v746 = vunpack.c.l.b16 %v708
        %v747 = vunpack.c.l.b16 %v709
        %v748 = vunpack.c.l.b16 %v710
        %v749 = vunpack.c.l.b16 %v711
        %v750 = vunpack.c.l.b16 %v712
        %v751 = vunpack.c.l.b16 %v713
        %v752 = vunpack.c.l.b16 %v714
        %v753 = vunpack.c.l.b16 %v715
        %v754 = vunpack.c.l.b16 %v716
        %v755 = vunpack.c.l.b16 %v717
        %v756 = vunpack.c.l.b16 %v718
        %v757 = vunpack.c.l.b16 %v719
        %v758 = vunpack.c.l.b16 %v720
        %v759 = vunpack.c.l.b16 %v721
        %v760 = vpack.c.b16 %v745, %v744
        %v761 = vpack.c.b16 %v747, %v746
        %v762 = vpack.c.b16 %v749, %v748
        %v763 = vpack.c.b16 %v751, %v750
        %v764 = vpack.c.b16 %v753, %v752
        %v765 = vpack.c.b16 %v755, %v754
        %v766 = vpack.c.b16 %v757, %v756
        %v767 = vpack.c.b16 %v759, %v758
        %776 = vmatprep.subr.bf16.mxu0 0
        %777 = vmatpush1.bf16.msra.mxu0 %v767
        %778 = vmatprep.subr.bf16.mxu0 0
        %779 = vmatpush1.bf16.msra.mxu0 %v766
        %780 = vmatprep.subr.bf16.mxu0 0
        %781 = vmatpush1.bf16.msra.mxu0 %v765
        %782 = vmatprep.subr.bf16.mxu0 0
        %783 = vmatpush1.bf16.msra.mxu0 %v764
        %784 = vmatprep.subr.bf16.mxu0 0
        %785 = vmatpush1.bf16.msra.mxu0 %v763
        %786 = vmatprep.subr.bf16.mxu0 0
        %787 = vmatpush1.bf16.msra.mxu0 %v762
        %788 = vmatprep.subr.bf16.mxu0 0
        %789 = vmatpush1.bf16.msra.mxu0 %v761
        %790 = vmatprep.subr.bf16.mxu0 0
        %791 = vmatpush1.bf16.msra.mxu0 %v760
        %792 = vmatprep.subr.bf16.mxu0 0
        %793 = vmatpush2.bf16.msra.mxu0 0
        %794 = vmatprep.subr.bf16.mxu0 0
        %795 = vmatpush2.bf16.msra.mxu0 0
        %796 = vmatprep.subr.bf16.mxu0 0
        %797 = vmatpush2.bf16.msra.mxu0 0
        %798 = vmatprep.subr.bf16.mxu0 0
        %799 = vmatpush2.bf16.msra.mxu0 0
        %800 = vmatprep.subr.bf16.mxu0 0
        %801 = vmatpush2.bf16.msra.mxu0 0
        %802 = vmatprep.subr.bf16.mxu0 0
        %803 = vmatpush2.bf16.msra.mxu0 0
        %804 = vmatprep.subr.bf16.mxu0 0
        %805 = vmatpush2.bf16.msra.mxu0 0
        %806 = vmatprep.subr.bf16.mxu0 0
        %807 = vmatpush2.bf16.msra.mxu0 0
        %808 = vmatprep.mubr.bf16.mxu0 0
        %809 = vmatmul.mubr.bf16.gmra.mxu0 %v704
        %v810 = vpop.f32.mrf.mxu0
        %v811 = vadd.f32 %v723, %v810
        %v812 = vpop.f32.mrf.mxu0
        %v813 = vpop.f32.mrf.mxu0
        %v814 = vadd.f32 %v725, %v813
        %v815 = vpop.f32.mrf.mxu0
        %816 = vmatprep.mubr.bf16.mxu0 0
        %817 = vmatmul.mubr.bf16.gmra.mxu0 %v705
        %v818 = vpop.f32.mrf.mxu0
        %v819 = vadd.f32 %v727, %v818
        %v820 = vpop.f32.mrf.mxu0
        %v821 = vpop.f32.mrf.mxu0
        %v822 = vpop.f32.mrf.mxu0
        %823 = vdwg.mxu0
        %v824 = vmax.f32 %v811, 1e-06
        %v825 = vmax.f32 %v814, 1e-06
        %v826 = vmax.f32 %v819, 1e-06
        %v827 = vadd.f32 %v824, 1e-06
        %v828 = vadd.f32 %v825, 1e-06
        %v829 = vadd.f32 %v826, 1e-06
        %v830 = vlog2.pop %v827
        %v831 = vmul.f32 %v830, 0.6931472
        %v832 = vlog2.pop %v828
        %v833 = vmul.f32 %v832, 0.6931472
        %v834 = vlog2.pop %v829
        %v835 = vmul.f32 %v834, 0.6931472
        %v836 = vmax.f32 %v831, -5.0
        %v837 = vmax.f32 %v833, -5.0
        %v838 = vmax.f32 %v835, -5.0
        %v839 = vmin.f32 %v836, 5.0
        %v840 = vmin.f32 %v837, 5.0
        %v841 = vmin.f32 %v838, 5.0
        %842 = vst [vmem:[%s298] sm:$0xff] %v839
        %843 = vst [vmem:[%s298 + $0x8] sm:$0xff] %v840
        %844 = vst [vmem:[%s298 + $0x10] sm:$0xff] %v841
        %s845 = sand.u32 %s143, 1
        %s846 = scalar_lea.sflag [#allocation4], %s845
        %s847 = sand.u32 %s143, 1
        %s848 = smul.addr %s847, 24
        %s849 = scalar_lea.vmem [#allocation12], %s848
        // Predicated region
        $region61: #{tpu_custom_call.1} parent=39 // pred_check
          %p850 = pneg %p153
        $region62: #{tpu_custom_call.1} parent=39 // pred_check_branch
          %852 = sbr.rel (%p850) target = $region64
        $region63: #{tpu_custom_call.1} parent=39 // pred_region
          %s854 = ssub.s32 384, 384
          %855 = vsyncadd %s846, %s854
          %s856 = smul.addr %s25, 3
          %s857 = smul.addr %s856, 128
          %s858 = scalar_lea.hbm %s5, %s857
          %s859 = sshll.u32 %s849, 4
          %s860 = int_to_ptr.vmem [resolvable:$true] %s859
          %865 = dma.vmem_to_hbm [thread:$0]  %s860, 384, %s858, %s846, 128, 128, 8
        $region64: #{tpu_custom_call.1} parent=39 // pred_fallthru
          _
      $region40: #{tpu_custom_call.1} parent=5 // pred_fallthru
        _
      %p866 = scmp.le.s32.totalorder 2, %s20
      // Predicated region
      $region65: #{tpu_custom_call.1} parent=5 // pred_check
        %p867 = pneg %p866
      $region66: #{tpu_custom_call.1} parent=5 // pred_check_branch
        %869 = sbr.rel (%p867) target = $region68
      $region67: #{tpu_custom_call.1} parent=5 // pred_region
        %s870 = ssub.s32 %s20, 2
        // Predicated region
        $region69: #{tpu_custom_call.1} parent=67 // pred_check
          %p871 = pneg %p159
        $region70: #{tpu_custom_call.1} parent=67 // pred_check_branch
          %873 = sbr.rel (%p871) target = $region72
        $region71: #{tpu_custom_call.1} parent=67 // pred_region
          %s874 = sand.u32 %s144, 1
          %s875 = scalar_lea.sflag [#allocation4], %s874
          %s876 = sand.u32 %s144, 1
          %s877 = smul.addr %s876, 24
          %s878 = scalar_lea.vmem [#allocation12], %s877
          %879 = dma.done %s875, 384
        $region72: #{tpu_custom_call.1} parent=67 // pred_fallthru
          _
      $region68: #{tpu_custom_call.1} parent=5 // pred_fallthru
        _
    $region6: #{tpu_custom_call.1} parent=1 // loop_footer
      %s24 = sadd.s32 1, %s20
    $region7: #{tpu_custom_call.1} parent=1 // loop_footer_branch
      %19 = sbr.rel target = $region3
    $region8: #{tpu_custom_call.1} parent=1 // loop_exit
      _
    %880 = vsyncpa [#allocation3], 1
    %s881 = scalar_lea.sflag [#allocation3], 1
    %882 = vsyncpa %s881, 1
    %883 = vsyncpa [#allocation7], 1
    %884 = vsyncpa [#allocation4], 1
    %s885 = scalar_lea.sflag [#allocation4], 1
    %886 = vsyncpa %s885, 1
    %887 = vsyncpa [#allocation5], 1
    %s888 = scalar_lea.sflag [#allocation5], 1
    %889 = vsyncpa %s888, 1
    %890 = vsyncpa [#allocation11], 1

</llo_original>
